<compile_context>
chip_gen: v7x
topology: tpu7x:2x2x1
jax: 0.10.0
libtpu: 0.0.40
codegen_flags: <defaults>
</compile_context>

<pallas_src>
import functools

import jax
import jax.numpy as jnp
from jax.experimental import pallas as pl
from jax.experimental.pallas import tpu as pltpu

NEG_SLOPE = 0.01  # torch.nn.LeakyReLU default


def _round_up(x, m):
    return ((x + m - 1) // m) * m


def _bipartite_res_mr_conv_kernel(row_splits_ref, e0_ref,            # scalar prefetch (SMEM)
                                  x_src_ref, x_dst_ref, w_ref, b_ref,  # inputs (VMEM)
                                  out_ref,                             # output tile (VMEM)
                                  *, edge_unroll):
    """One grid step == one tile of DT destination rows.

    row_splits_ref : SMEM int32 [N_dst_pad + 1]  CSR offsets of dst-sorted edges
    e0_ref         : SMEM int32 [E + edge_unroll] dst-sorted source indices (padded)
    x_src_ref      : VMEM f32   [N_src, W]        full source features (gather table)
    x_dst_ref      : VMEM f32   [DT, W]           destination-row tile
    w_ref          : VMEM f32/bf16 [2W, W]        Linear weight (already transposed)
    b_ref          : VMEM f32   [1, W]
    out_ref        : VMEM f32   [DT, W]           output tile; per-row min written once
    """
    dt, width = out_ref.shape
    t = pl.program_id(0)
    row_base = t * dt

    # +inf sentinel == "no incoming edge yet" (torch_scatter fills empty rows with 0;
    # the epilogue maps inf -> 0).  Hoisted out of all loops.
    inf_row = jnp.full((1, width), jnp.inf, jnp.float32)

    def per_row(d, lo):
        # `lo` is carried from the previous row's `hi` -> one SMEM read per row.
        hi = row_splits_ref[row_base + d + 1]

        def group_cond(state):
            j, _ = state
            return j < hi

        def group_body(state):
            # Process `edge_unroll` edges of this destination row:
            #   - edge_unroll independent [1, W] dynamic-slice gathers (no stores),
            #   - out-of-range lanes of the group replaced by +inf,
            #   - pairwise min tree, folded into the running vreg min.
            j, m = state
            rows = []
            for u in range(edge_unroll):
                idx = e0_ref[j + u]
                r = x_src_ref[pl.ds(idx, 1), :]
                rows.append(jnp.where(j + u < hi, r, inf_row))
            while len(rows) > 1:
                nxt = [jnp.minimum(rows[2 * i], rows[2 * i + 1])
                       for i in range(len(rows) // 2)]
                if len(rows) % 2:
                    nxt.append(rows[-1])
                rows = nxt
            return j + edge_unroll, jnp.minimum(m, rows[0])

        _, m = jax.lax.while_loop(group_cond, group_body, (lo, inf_row))
        out_ref[pl.ds(d, 1), :] = m          # exactly one store per destination row
        return hi

    jax.lax.fori_loop(0, dt, per_row, row_splits_ref[row_base])

    # Finalize:  maxes[d] = x_dst[d] - min_src[d]  (== scatter_max of the diffs),
    # 0 for rows with no incoming edge, then Linear(2W->W) + LeakyReLU + residual.
    x_dst = x_dst_ref[...]
    min_src = out_ref[...]
    maxes = jnp.where(min_src == jnp.inf, jnp.zeros_like(x_dst), x_dst - min_src)

    # cat([x_dst, maxes], 1) @ W_t  ==  x_dst @ W_t[:W] + maxes @ W_t[W:]
    mm_dtype = w_ref.dtype                   # f32 by default; bf16 opt-in
    w1 = w_ref[0:width, :]
    w2 = w_ref[width:2 * width, :]
    h = (jnp.dot(x_dst.astype(mm_dtype), w1, preferred_element_type=jnp.float32)
         + jnp.dot(maxes.astype(mm_dtype), w2, preferred_element_type=jnp.float32)
         + b_ref[...])
    act = jnp.where(h > 0, h, NEG_SLOPE * h)
    out_ref[...] = (x_dst + act).astype(out_ref.dtype)


def bipartite_res_mr_conv(x_src, x_dst, e, weight, bias, *,
                          dst_tile=256, edge_unroll=8, use_bf16_matmul=False):
    """weight: torch Linear layout [W, 2W]; bias: [W]; e: int [2, E]."""
    assert edge_unroll >= 1
    n_src, width = x_src.shape
    n_dst = x_dst.shape[0]
    num_edges = e.shape[1]

    dt = min(_round_up(dst_tile, 8), _round_up(max(n_dst, 1), 8))
    n_dst_pad = _round_up(max(n_dst, 1), dt)
    num_tiles = n_dst_pad // dt

    # Sort edges by destination (CSR layout) on the wrapper side.
    e0 = e[0].astype(jnp.int32)
    e1 = e[1].astype(jnp.int32)
    order = jnp.argsort(e1)
    e0_sorted = e0[order]
    e1_sorted = e1[order]
    row_splits = jnp.searchsorted(
        e1_sorted, jnp.arange(n_dst_pad + 1, dtype=jnp.int32), side="left"
    ).astype(jnp.int32)

    # Pad the sorted source indices so an unrolled group starting just before the last
    # real edge can be read; padded entries point at row 0 and are masked in-kernel.
    e0_padded = jnp.concatenate([e0_sorted, jnp.zeros((edge_unroll,), jnp.int32)])

    x_src_f = x_src.astype(jnp.float32)
    x_dst_f = jnp.pad(x_dst.astype(jnp.float32), ((0, n_dst_pad - n_dst), (0, 0)))

    mm_dtype = jnp.bfloat16 if use_bf16_matmul else jnp.float32
    w_t = weight.T.astype(mm_dtype)                        # [2W, W]
    b = bias.reshape(1, width).astype(jnp.float32)

    grid_spec = pltpu.PrefetchScalarGridSpec(
        num_scalar_prefetch=2,                             # row_splits, e0_padded
        grid=(num_tiles,),
        in_specs=[
            pl.BlockSpec((n_src, width), lambda t, *_: (0, 0)),       # x_src (resident)
            pl.BlockSpec((dt, width), lambda t, *_: (t, 0)),          # x_dst tile
            pl.BlockSpec((2 * width, width), lambda t, *_: (0, 0)),   # weight^T
            pl.BlockSpec((1, width), lambda t, *_: (0, 0)),           # bias
        ],
        out_specs=pl.BlockSpec((dt, width), lambda t, *_: (t, 0)),
    )

    # Per-generation VMEM budget: ~48 MiB on v7x (64 MiB physical), 96 MiB on v5e/v6e
    # (128 MiB physical); falls back to 48 MiB if the query is unavailable.
    try:
        vmem_cap = int(pltpu.get_tpu_info().vmem_capacity_bytes)
    except Exception:  # pragma: no cover - conservative fallback
        vmem_cap = 64 * 1024 * 1024
    vmem_limit = int(min(vmem_cap * 3 // 4, 96 * 1024 * 1024))

    flops = 2 * n_dst_pad * (2 * width) * width + 4 * (num_edges + 1) * width
    bytes_accessed = ((n_src + 3 * n_dst_pad) * width * 4
                      + (num_edges + edge_unroll) * width * 4
                      + 4 * (num_edges + edge_unroll + n_dst_pad + 1))

    out = pl.pallas_call(
        functools.partial(_bipartite_res_mr_conv_kernel, edge_unroll=edge_unroll),
        out_shape=jax.ShapeDtypeStruct((n_dst_pad, width), jnp.float32),
        grid_spec=grid_spec,
        compiler_params=pltpu.CompilerParams(
            dimension_semantics=("parallel",),             # 2 TCs on v7x; harmless elsewhere
            vmem_limit_bytes=vmem_limit,
        ),
        cost_estimate=pl.CostEstimate(
            flops=int(flops), transcendentals=0, bytes_accessed=int(bytes_accessed)),
    )(row_splits, e0_padded, x_src_f, x_dst_f, w_t, b)

    return out[:n_dst].astype(x_dst.dtype)


def _reference(x_src, x_dst, e, weight, bias):
    diffs = x_dst[e[1]] - x_src[e[0]]
    maxes = jax.ops.segment_max(diffs, e[1], num_segments=x_dst.shape[0])
    maxes = jnp.where(jnp.isneginf(maxes), 0.0, maxes)
    a = jnp.concatenate([x_dst, maxes], axis=1)
    h = jnp.dot(a, weight.T, precision=jax.lax.Precision.HIGHEST) + bias
    act = jnp.where(h > 0, h, NEG_SLOPE * h)
    return x_dst + act


if __name__ == "__main__":
    key = jax.random.PRNGKey(0)
    k_src, k_dst, k_e0, k_e1, k_w, k_b = jax.random.split(key, 6)

    width = 32
    n_src, n_dst, n_edges = 96, 80, 256

    x_src = jax.random.normal(k_src, (n_src, width), dtype=jnp.float32)
    x_dst = jax.random.normal(k_dst, (n_dst, width), dtype=jnp.float32)
    e = jnp.stack([
        jax.random.randint(k_e0, (n_edges,), 0, n_src, dtype=jnp.int32),
        jax.random.randint(k_e1, (n_edges,), 0, n_dst, dtype=jnp.int32),
    ], axis=0)  # [2, E]

    # Linear(2*width, width) params, torch layout [W, 2W] / [W]
    bound = 1.0 / jnp.sqrt(2.0 * width)
    weight = jax.random.uniform(k_w, (width, 2 * width), jnp.float32, -bound, bound)
    bias = jax.random.uniform(k_b, (width,), jnp.float32, -bound, bound)

    ref = _reference(x_src, x_dst, e, weight, bias)

    # Small tile so the demo exercises multiple grid tiles (and megacore sharding).
    out_multi = bipartite_res_mr_conv(x_src, x_dst, e, weight, bias, dst_tile=32)
    out_multi = jax.block_until_ready(out_multi)
    assert out_multi.shape == (n_dst, width)
    # Kernel matmul is f32; tolerance covers MXU-vs-XLA f32 matmul pass differences.
    assert jnp.allclose(out_multi, ref, atol=5e-2, rtol=5e-2), "multi-tile mismatch"

    # Default (large-tile, single-tile here) configuration.
    out_def = bipartite_res_mr_conv(x_src, x_dst, e, weight, bias)
    out_def = jax.block_until_ready(out_def)
    assert out_def.shape == (n_dst, width)
    assert jnp.allclose(out_def, ref, atol=5e-2, rtol=5e-2), "default-tile mismatch"

    print("KERNEL_OK")
</pallas_src>

<mosaic_0001>
module attributes {stable_mosaic.version = 11 : i64} {
  func.func @_bipartite_res_mr_conv_kernel(%arg0: i32, %arg1: memref<97xi32, #tpu.memory_space<smem>>, %arg2: memref<264xi32, #tpu.memory_space<smem>>, %arg3: memref<96x32xf32, #tpu.memory_space<vmem>>, %arg4: memref<32x32xf32, #tpu.memory_space<vmem>>, %arg5: memref<64x32xf32, #tpu.memory_space<vmem>>, %arg6: memref<1x32xf32, #tpu.memory_space<vmem>>, %arg7: memref<32x32xf32, #tpu.memory_space<vmem>>) attributes {dimension_semantics = [#tpu.dimension_semantics<parallel>], iteration_bounds = array<i64: 3>, scalar_prefetch = 2 : i64, scratch_operands = 0 : i64, tpu.core_type = #tpu.core_type<tc>, window_params = [{pipeline_mode = #tpu.pipeline_mode<synchronous>, transform_indices = @transform_0, window_bounds = array<i64: 96, 32>}, {transform_indices = @transform_1, window_bounds = array<i64: 32, 32>}, {pipeline_mode = #tpu.pipeline_mode<synchronous>, transform_indices = @transform_2, window_bounds = array<i64: 64, 32>}, {pipeline_mode = #tpu.pipeline_mode<synchronous>, transform_indices = @transform_3, window_bounds = array<i64: 1, 32>}, {transform_indices = @transform_4, window_bounds = array<i64: 32, 32>}]} {
    %c32_i32 = arith.constant 32 : i32
    %0 = arith.muli %arg0, %c32_i32 : i32
    %cst = arith.constant 0x7F800000 : f32
    %1 = vector.broadcast %cst : f32 to vector<1x32xf32>
    %2 = arith.index_cast %0 : i32 to index
    %3 = memref.load %arg1[%2] : memref<97xi32, #tpu.memory_space<smem>>
    %c0_i32 = arith.constant 0 : i32
    %c32_i32_0 = arith.constant 32 : i32
    %4 = arith.addi %c0_i32, %c32_i32_0 : i32
    %c1_i32 = arith.constant 1 : i32
    %5 = scf.for %arg8 = %c0_i32 to %4 step %c1_i32 iter_args(%arg9 = %3) -> (i32)  : i32 {
      %28 = arith.addi %0, %arg8 : i32
      %c1_i32_18 = arith.constant 1 : i32
      %29 = arith.addi %28, %c1_i32_18 : i32
      %30 = arith.index_cast %29 : i32 to index
      %31 = memref.load %arg1[%30] : memref<97xi32, #tpu.memory_space<smem>>
      %32:2 = scf.while (%arg10 = %arg9, %arg11 = %1) : (i32, vector<1x32xf32>) -> (i32, vector<1x32xf32>) {
        %35 = arith.cmpi slt, %arg10, %31 : i32
        scf.condition(%35) %arg10, %arg11 : i32, vector<1x32xf32>
      } do {
      ^bb0(%arg10: i32, %arg11: vector<1x32xf32>):
        %c0_i32_20 = arith.constant 0 : i32
        %35 = arith.addi %arg10, %c0_i32_20 : i32
        %36 = arith.index_cast %35 : i32 to index
        %37 = memref.load %arg2[%36] : memref<264xi32, #tpu.memory_space<smem>>
        %38 = arith.index_cast %37 : i32 to index
        %c0_21 = arith.constant 0 : index
        %39 = vector.load %arg3[%38, %c0_21] : memref<96x32xf32, #tpu.memory_space<vmem>>, vector<1x32xf32>
        %c0_i32_22 = arith.constant 0 : i32
        %40 = arith.addi %arg10, %c0_i32_22 : i32
        %41 = arith.cmpi slt, %40, %31 : i32
        %42 = arith.select %41, %39, %1 : vector<1x32xf32>
        %c1_i32_23 = arith.constant 1 : i32
        %43 = arith.addi %arg10, %c1_i32_23 : i32
        %44 = arith.index_cast %43 : i32 to index
        %45 = memref.load %arg2[%44] : memref<264xi32, #tpu.memory_space<smem>>
        %46 = arith.index_cast %45 : i32 to index
        %c0_24 = arith.constant 0 : index
        %47 = vector.load %arg3[%46, %c0_24] : memref<96x32xf32, #tpu.memory_space<vmem>>, vector<1x32xf32>
        %c1_i32_25 = arith.constant 1 : i32
        %48 = arith.addi %arg10, %c1_i32_25 : i32
        %49 = arith.cmpi slt, %48, %31 : i32
        %50 = arith.select %49, %47, %1 : vector<1x32xf32>
        %c2_i32 = arith.constant 2 : i32
        %51 = arith.addi %arg10, %c2_i32 : i32
        %52 = arith.index_cast %51 : i32 to index
        %53 = memref.load %arg2[%52] : memref<264xi32, #tpu.memory_space<smem>>
        %54 = arith.index_cast %53 : i32 to index
        %c0_26 = arith.constant 0 : index
        %55 = vector.load %arg3[%54, %c0_26] : memref<96x32xf32, #tpu.memory_space<vmem>>, vector<1x32xf32>
        %c2_i32_27 = arith.constant 2 : i32
        %56 = arith.addi %arg10, %c2_i32_27 : i32
        %57 = arith.cmpi slt, %56, %31 : i32
        %58 = arith.select %57, %55, %1 : vector<1x32xf32>
        %c3_i32 = arith.constant 3 : i32
        %59 = arith.addi %arg10, %c3_i32 : i32
        %60 = arith.index_cast %59 : i32 to index
        %61 = memref.load %arg2[%60] : memref<264xi32, #tpu.memory_space<smem>>
        %62 = arith.index_cast %61 : i32 to index
        %c0_28 = arith.constant 0 : index
        %63 = vector.load %arg3[%62, %c0_28] : memref<96x32xf32, #tpu.memory_space<vmem>>, vector<1x32xf32>
        %c3_i32_29 = arith.constant 3 : i32
        %64 = arith.addi %arg10, %c3_i32_29 : i32
        %65 = arith.cmpi slt, %64, %31 : i32
        %66 = arith.select %65, %63, %1 : vector<1x32xf32>
        %c4_i32 = arith.constant 4 : i32
        %67 = arith.addi %arg10, %c4_i32 : i32
        %68 = arith.index_cast %67 : i32 to index
        %69 = memref.load %arg2[%68] : memref<264xi32, #tpu.memory_space<smem>>
        %70 = arith.index_cast %69 : i32 to index
        %c0_30 = arith.constant 0 : index
        %71 = vector.load %arg3[%70, %c0_30] : memref<96x32xf32, #tpu.memory_space<vmem>>, vector<1x32xf32>
        %c4_i32_31 = arith.constant 4 : i32
        %72 = arith.addi %arg10, %c4_i32_31 : i32
        %73 = arith.cmpi slt, %72, %31 : i32
        %74 = arith.select %73, %71, %1 : vector<1x32xf32>
        %c5_i32 = arith.constant 5 : i32
        %75 = arith.addi %arg10, %c5_i32 : i32
        %76 = arith.index_cast %75 : i32 to index
        %77 = memref.load %arg2[%76] : memref<264xi32, #tpu.memory_space<smem>>
        %78 = arith.index_cast %77 : i32 to index
        %c0_32 = arith.constant 0 : index
        %79 = vector.load %arg3[%78, %c0_32] : memref<96x32xf32, #tpu.memory_space<vmem>>, vector<1x32xf32>
        %c5_i32_33 = arith.constant 5 : i32
        %80 = arith.addi %arg10, %c5_i32_33 : i32
        %81 = arith.cmpi slt, %80, %31 : i32
        %82 = arith.select %81, %79, %1 : vector<1x32xf32>
        %c6_i32 = arith.constant 6 : i32
        %83 = arith.addi %arg10, %c6_i32 : i32
        %84 = arith.index_cast %83 : i32 to index
        %85 = memref.load %arg2[%84] : memref<264xi32, #tpu.memory_space<smem>>
        %86 = arith.index_cast %85 : i32 to index
        %c0_34 = arith.constant 0 : index
        %87 = vector.load %arg3[%86, %c0_34] : memref<96x32xf32, #tpu.memory_space<vmem>>, vector<1x32xf32>
        %c6_i32_35 = arith.constant 6 : i32
        %88 = arith.addi %arg10, %c6_i32_35 : i32
        %89 = arith.cmpi slt, %88, %31 : i32
        %90 = arith.select %89, %87, %1 : vector<1x32xf32>
        %c7_i32 = arith.constant 7 : i32
        %91 = arith.addi %arg10, %c7_i32 : i32
        %92 = arith.index_cast %91 : i32 to index
        %93 = memref.load %arg2[%92] : memref<264xi32, #tpu.memory_space<smem>>
        %94 = arith.index_cast %93 : i32 to index
        %c0_36 = arith.constant 0 : index
        %95 = vector.load %arg3[%94, %c0_36] : memref<96x32xf32, #tpu.memory_space<vmem>>, vector<1x32xf32>
        %c7_i32_37 = arith.constant 7 : i32
        %96 = arith.addi %arg10, %c7_i32_37 : i32
        %97 = arith.cmpi slt, %96, %31 : i32
        %98 = arith.select %97, %95, %1 : vector<1x32xf32>
        %99 = arith.minimumf %42, %50 : vector<1x32xf32>
        %100 = arith.minimumf %58, %66 : vector<1x32xf32>
        %101 = arith.minimumf %74, %82 : vector<1x32xf32>
        %102 = arith.minimumf %90, %98 : vector<1x32xf32>
        %103 = arith.minimumf %99, %100 : vector<1x32xf32>
        %104 = arith.minimumf %101, %102 : vector<1x32xf32>
        %105 = arith.minimumf %103, %104 : vector<1x32xf32>
        %c8_i32 = arith.constant 8 : i32
        %106 = arith.addi %arg10, %c8_i32 : i32
        %107 = arith.minimumf %arg11, %105 : vector<1x32xf32>
        scf.yield %106, %107 : i32, vector<1x32xf32>
      }
      %33 = arith.index_cast %arg8 : i32 to index
      %c0_19 = arith.constant 0 : index
      %34 = vector.load %arg7[%33, %c0_19] : memref<32x32xf32, #tpu.memory_space<vmem>>, vector<1x32xf32>
      tpu.vector_store %arg7[%33, %c0_19], %32#1 {strides = array<i32>} : memref<32x32xf32, #tpu.memory_space<vmem>>, vector<1x32xf32>,
      scf.yield %31 : i32
    }
    %c32_i32_1 = arith.constant 32 : i32
    %c0 = arith.constant 0 : index
    %c0_2 = arith.constant 0 : index
    %6 = vector.load %arg4[%c0, %c0_2] : memref<32x32xf32, #tpu.memory_space<vmem>>, vector<32x32xf32>
    %c0_3 = arith.constant 0 : index
    %c0_4 = arith.constant 0 : index
    %7 = vector.load %arg7[%c0_3, %c0_4] : memref<32x32xf32, #tpu.memory_space<vmem>>, vector<32x32xf32>
    %cst_5 = arith.constant 0x7F800000 : f32
    %8 = vector.broadcast %cst_5 : f32 to vector<32x32xf32>
    %9 = arith.cmpf oeq, %7, %8 : vector<32x32xf32>
    %cst_6 = arith.constant 0.000000e+00 : f32
    %10 = vector.broadcast %cst_6 : f32 to vector<32x32xf32>
    %11 = arith.subf %6, %7 : vector<32x32xf32>
    %12 = arith.select %9, %10, %11 : vector<32x32xi1>, vector<32x32xf32>
    %c0_7 = arith.constant 0 : index
    %c0_8 = arith.constant 0 : index
    %13 = vector.load %arg5[%c0_7, %c0_8] : memref<64x32xf32, #tpu.memory_space<vmem>>, vector<32x32xf32>
    %c32 = arith.constant 32 : index
    %c0_9 = arith.constant 0 : index
    %14 = vector.load %arg5[%c32, %c0_9] : memref<64x32xf32, #tpu.memory_space<vmem>>, vector<32x32xf32>
    %cst_10 = arith.constant dense<0.000000e+00> : vector<32x32xf32>
    %15 = tpu.matmul %6, %13, %cst_10 {dimension_numbers = #tpu.dot_dimension_numbers<[1], [0], [0], [1], [0, 0, 1, 1], [], []>} : vector<32x32xf32>, vector<32x32xf32>, vector<32x32xf32> -> vector<32x32xf32>
    %cst_11 = arith.constant dense<0.000000e+00> : vector<32x32xf32>
    %16 = tpu.matmul %12, %14, %cst_11 {dimension_numbers = #tpu.dot_dimension_numbers<[1], [0], [0], [1], [0, 0, 1, 1], [], []>} : vector<32x32xf32>, vector<32x32xf32>, vector<32x32xf32> -> vector<32x32xf32>
    %17 = arith.addf %15, %16 : vector<32x32xf32>
    %c0_12 = arith.constant 0 : index
    %c0_13 = arith.constant 0 : index
    %18 = vector.load %arg6[%c0_12, %c0_13] : memref<1x32xf32, #tpu.memory_space<vmem>>, vector<1x32xf32>
    %19 = vector.broadcast %18 : vector<1x32xf32> to vector<32x32xf32>
    %20 = arith.addf %17, %19 : vector<32x32xf32>
    %cst_14 = arith.constant 0.000000e+00 : f32
    %21 = vector.broadcast %cst_14 : f32 to vector<32x32xf32>
    %22 = arith.cmpf ogt, %20, %21 : vector<32x32xf32>
    %cst_15 = arith.constant 0.00999999977 : f32
    %23 = vector.broadcast %cst_15 : f32 to vector<32x32xf32>
    %24 = arith.mulf %23, %20 : vector<32x32xf32>
    %25 = arith.select %22, %20, %24 : vector<32x32xi1>, vector<32x32xf32>
    %26 = arith.addf %6, %25 : vector<32x32xf32>
    %c0_16 = arith.constant 0 : index
    %c0_17 = arith.constant 0 : index
    %27 = vector.load %arg7[%c0_16, %c0_17] : memref<32x32xf32, #tpu.memory_space<vmem>>, vector<32x32xf32>
    tpu.vector_store %arg7[%c0_16, %c0_17], %26 {strides = array<i32>} : memref<32x32xf32, #tpu.memory_space<vmem>>, vector<32x32xf32>,
    return
  }
  func.func @transform_0(%arg0: i32, %arg1: memref<97xi32, #tpu.memory_space<smem>>, %arg2: memref<264xi32, #tpu.memory_space<smem>>) -> (i32, i32) {
    %c0_i32 = arith.constant 0 : i32
    %c0_i32_0 = arith.constant 0 : i32
    %c0_i32_1 = arith.constant 0 : i32
    return %c0_i32, %c0_i32_0 : i32, i32
  }
  func.func @transform_1(%arg0: i32, %arg1: memref<97xi32, #tpu.memory_space<smem>>, %arg2: memref<264xi32, #tpu.memory_space<smem>>) -> (i32, i32) {
    %c0_i32 = arith.constant 0 : i32
    %c0_i32_0 = arith.constant 0 : i32
    return %arg0, %c0_i32 : i32, i32
  }
  func.func @transform_2(%arg0: i32, %arg1: memref<97xi32, #tpu.memory_space<smem>>, %arg2: memref<264xi32, #tpu.memory_space<smem>>) -> (i32, i32) {
    %c0_i32 = arith.constant 0 : i32
    %c0_i32_0 = arith.constant 0 : i32
    %c0_i32_1 = arith.constant 0 : i32
    return %c0_i32, %c0_i32_0 : i32, i32
  }
  func.func @transform_3(%arg0: i32, %arg1: memref<97xi32, #tpu.memory_space<smem>>, %arg2: memref<264xi32, #tpu.memory_space<smem>>) -> (i32, i32) {
    %c0_i32 = arith.constant 0 : i32
    %c0_i32_0 = arith.constant 0 : i32
    %c0_i32_1 = arith.constant 0 : i32
    return %c0_i32, %c0_i32_0 : i32, i32
  }
  func.func @transform_4(%arg0: i32, %arg1: memref<97xi32, #tpu.memory_space<smem>>, %arg2: memref<264xi32, #tpu.memory_space<smem>>) -> (i32, i32) {
    %c0_i32 = arith.constant 0 : i32
    %c0_i32_0 = arith.constant 0 : i32
    return %arg0, %c0_i32 : i32, i32
  }
}

</mosaic_0001>

<llo_original>
// kernel: tpu_custom_call.1
$region0: #{tpu_custom_call.1}
  #allocation0 [shape = 'u32[]', space=smem, size = 0x4, offset = 0x4, fixed_abs, tag = 'smem constant byte address 0x4 - core index']
  #allocation1 [shape = 'u32[144,128]{1,0:T(1,128)}', space=vmem, size = 0x12000, scoped, tag = 'internal scratch']
  #allocation2 [shape = 's32[1]{0}', space=sflag, size = 0x4, scoped, tag = 'scoped memory for tpu_custom_call.1']
  #allocation3 [shape = 'u8[512]{0}', space=smem, size = 0x200, scoped, tag = 'prefetched SMEM operand 0']
  #allocation4 [shape = 'u8[1536]{0}', space=smem, size = 0x600, scoped, tag = 'prefetched SMEM operand 1']
  %s0 = inlined_call_operand.vmem [shape: s32[97], index: 0, kind: input, shape index: {}]
  %s1 = inlined_call_operand.vmem [shape: s32[264], index: 1, kind: input, shape index: {}]
  %s2 = inlined_call_operand.vmem [shape: f32[96,32], index: 2, kind: input, shape index: {}]
  %s3 = inlined_call_operand.vmem [shape: f32[96,32], index: 3, kind: input, shape index: {}]
  %s4 = inlined_call_operand.vmem [shape: f32[64,32], index: 4, kind: input, shape index: {}]
  %s5 = inlined_call_operand.vmem [shape: f32[1,32], index: 5, kind: input, shape index: {}]
  %s6 = inlined_call_operand.vmem [shape: f32[96,32], index: 6, kind: output, shape index: {}]
  %s7 = sld [smem:[#allocation0]]
  $region63: #{tpu_custom_call.1} parent=0
    _
  %s9 = ssub.s32 1, %s7
  %s10 = scalar_select 0, %s9, %s7
  %s11 = sshll.u32 %s0, 4
  %s12 = int_to_ptr.vmem [resolvable:$true] %s11
  %14 = dma.vmem_to_smem %s12, 16, [#allocation3], [#allocation2]
  %s15 = sshll.u32 %s1, 4
  %s16 = int_to_ptr.vmem [resolvable:$true] %s15
  %18 = dma.vmem_to_smem %s16, 48, [#allocation4], [#allocation2]
  %19 = dma.done [#allocation2], 64
  %20 = sfence
  loop: start=0, step=1, limit=5
  $region2: #{tpu_custom_call.1} parent=0 // loop_pre_header
    _
  $region3: #{tpu_custom_call.1} parent=0 // loop_header
    %s22 = sphi 0, %s26
    %p23 = scmp.ge.s32.totalorder %s22, 5
    %s30 = sphi 0, %s30
    %s32 = sphi 0, %s30
    %s33 = sphi 0, %s32
    %s47 = sphi 0, %s33
    %s53 = sphi 0, %s55
    %s56 = sphi 0, %s53
    %s57 = sphi 0, %s56
    %s73 = sphi 0, %s57
    %s77 = sphi 0, %s77
    %s79 = sphi 0, %s77
    %s80 = sphi 0, %s79
    %s94 = sphi 0, %s80
    %s98 = sphi 0, %s98
    %s100 = sphi 0, %s98
    %s101 = sphi 0, %s100
    %s115 = sphi 0, %s101
    %s121 = sphi 0, %s123
    %s124 = sphi 0, %s121
    %s125 = sphi 0, %s124
    %s141 = sphi 0, %s125
  $region4: #{tpu_custom_call.1} parent=0 // loop_header_branch
    %25 = sbr.rel (%p23) target = $region8
  $region5: #{tpu_custom_call.1} parent=0 // loop_body
    %s27 = ssub.s32 %s22, 1
    %s28 = ssub.s32 %s22, 2
    %s29 = sadd.s32 %s22, 1
    %s31 = sadd.s32 %s30, 1
    %p34 = scmp.eq.s32.totalorder %s22, 2
    %p35 = scmp.ne.s32.totalorder %s30, %s32
    %p36 = scmp.eq.s32.totalorder %s22, 0
    %p37 = por %p35, %p36
    %p38 = scmp.ne.s32.totalorder %s30, %s32
    %p39 = scmp.eq.s32.totalorder %s27, 2
    %p40 = por %p38, %p39
    %p41 = scmp.ne.s32.totalorder %s32, %s33
    %p42 = scmp.eq.s32.totalorder %s27, 0
    %p43 = por %p41, %p42
    %p44 = scmp.ne.s32.totalorder %s32, %s33
    %p45 = scmp.eq.s32.totalorder %s28, 2
    %p46 = por %p44, %p45
    %p48 = scmp.ne.s32.totalorder %s33, %s47
    %p49 = scmp.eq.s32.totalorder %s28, 0
    %p50 = por %p48, %p49
    %s51 = ssub.s32 %s22, %s29
    %p52 = scmp.eq.s32.totalorder %s51, 0
    %s54 = sadd.s32 %s53, 1
    %s55 = scalar_select %p52, %s53, %s54
    %p58 = pneg %p52
    %p59 = scmp.eq.s32.totalorder %s22, 2
    %p60 = por %p58, %p59
    %p61 = scmp.ne.s32.totalorder %s53, %s56
    %p62 = scmp.eq.s32.totalorder %s22, 0
    %p63 = por %p61, %p62
    %p64 = scmp.ne.s32.totalorder %s53, %s56
    %p65 = scmp.eq.s32.totalorder %s27, 2
    %p66 = por %p64, %p65
    %p67 = scmp.ne.s32.totalorder %s56, %s57
    %p68 = scmp.eq.s32.totalorder %s27, 0
    %p69 = por %p67, %p68
    %p70 = scmp.ne.s32.totalorder %s56, %s57
    %p71 = scmp.eq.s32.totalorder %s28, 2
    %p72 = por %p70, %p71
    %p74 = scmp.ne.s32.totalorder %s57, %s73
    %p75 = scmp.eq.s32.totalorder %s28, 0
    %p76 = por %p74, %p75
    %s78 = sadd.s32 %s77, 1
    %p81 = scmp.eq.s32.totalorder %s22, 2
    %p82 = scmp.ne.s32.totalorder %s77, %s79
    %p83 = scmp.eq.s32.totalorder %s22, 0
    %p84 = por %p82, %p83
    %p85 = scmp.ne.s32.totalorder %s77, %s79
    %p86 = scmp.eq.s32.totalorder %s27, 2
    %p87 = por %p85, %p86
    %p88 = scmp.ne.s32.totalorder %s79, %s80
    %p89 = scmp.eq.s32.totalorder %s27, 0
    %p90 = por %p88, %p89
    %p91 = scmp.ne.s32.totalorder %s79, %s80
    %p92 = scmp.eq.s32.totalorder %s28, 2
    %p93 = por %p91, %p92
    %p95 = scmp.ne.s32.totalorder %s80, %s94
    %p96 = scmp.eq.s32.totalorder %s28, 0
    %p97 = por %p95, %p96
    %s99 = sadd.s32 %s98, 1
    %p102 = scmp.eq.s32.totalorder %s22, 2
    %p103 = scmp.ne.s32.totalorder %s98, %s100
    %p104 = scmp.eq.s32.totalorder %s22, 0
    %p105 = por %p103, %p104
    %p106 = scmp.ne.s32.totalorder %s98, %s100
    %p107 = scmp.eq.s32.totalorder %s27, 2
    %p108 = por %p106, %p107
    %p109 = scmp.ne.s32.totalorder %s100, %s101
    %p110 = scmp.eq.s32.totalorder %s27, 0
    %p111 = por %p109, %p110
    %p112 = scmp.ne.s32.totalorder %s100, %s101
    %p113 = scmp.eq.s32.totalorder %s28, 2
    %p114 = por %p112, %p113
    %p116 = scmp.ne.s32.totalorder %s101, %s115
    %p117 = scmp.eq.s32.totalorder %s28, 0
    %p118 = por %p116, %p117
    %s119 = ssub.s32 %s22, %s29
    %p120 = scmp.eq.s32.totalorder %s119, 0
    %s122 = sadd.s32 %s121, 1
    %s123 = scalar_select %p120, %s121, %s122
    %p126 = pneg %p120
    %p127 = scmp.eq.s32.totalorder %s22, 2
    %p128 = por %p126, %p127
    %p129 = scmp.ne.s32.totalorder %s121, %s124
    %p130 = scmp.eq.s32.totalorder %s22, 0
    %p131 = por %p129, %p130
    %p132 = scmp.ne.s32.totalorder %s121, %s124
    %p133 = scmp.eq.s32.totalorder %s27, 2
    %p134 = por %p132, %p133
    %p135 = scmp.ne.s32.totalorder %s124, %s125
    %p136 = scmp.eq.s32.totalorder %s27, 0
    %p137 = por %p135, %p136
    %p138 = scmp.ne.s32.totalorder %s124, %s125
    %p139 = scmp.eq.s32.totalorder %s28, 2
    %p140 = por %p138, %p139
    %p142 = scmp.ne.s32.totalorder %s125, %s141
    %p143 = scmp.eq.s32.totalorder %s28, 0
    %p144 = por %p142, %p143
    %p145 = scmp.le.s32.totalorder 1, %s22
    %p146 = scmp.lt.s32.totalorder %s22, 4
    %p147 = pnand %p145, %p146
    %p148 = pneg %p147
    // Predicated region
    $region9: #{tpu_custom_call.1} parent=5 // pred_check
      _
    $region10: #{tpu_custom_call.1} parent=5 // pred_check_branch
      %150 = sbr.rel (%p147) target = $region12
    $region11: #{tpu_custom_call.1} parent=5 // pred_region
      %s151 = ssub.s32 %s22, 1
      // Predicated region
      $region13: #{tpu_custom_call.1} parent=11 // pred_check
        %p152 = pneg %p43
      $region14: #{tpu_custom_call.1} parent=11 // pred_check_branch
        %154 = sbr.rel (%p152) target = $region16
      $region15: #{tpu_custom_call.1} parent=11 // pred_region
        _
      $region16: #{tpu_custom_call.1} parent=11 // pred_fallthru
        _
      // Predicated region
      $region17: #{tpu_custom_call.1} parent=11 // pred_check
        %p155 = pneg %p90
      $region18: #{tpu_custom_call.1} parent=11 // pred_check_branch
        %157 = sbr.rel (%p155) target = $region20
      $region19: #{tpu_custom_call.1} parent=11 // pred_region
        _
      $region20: #{tpu_custom_call.1} parent=11 // pred_fallthru
        _
      // Predicated region
      $region21: #{tpu_custom_call.1} parent=11 // pred_check
        %p158 = pneg %p111
      $region22: #{tpu_custom_call.1} parent=11 // pred_check_branch
        %160 = sbr.rel (%p158) target = $region24
      $region23: #{tpu_custom_call.1} parent=11 // pred_region
        _
      $region24: #{tpu_custom_call.1} parent=11 // pred_fallthru
        _
    $region12: #{tpu_custom_call.1} parent=5 // pred_fallthru
      _
    %p161 = scmp.lt.s32.totalorder %s22, 3
    // Predicated region
    $region25: #{tpu_custom_call.1} parent=5 // pred_check
      %p162 = pneg %p161
    $region26: #{tpu_custom_call.1} parent=5 // pred_check_branch
      %164 = sbr.rel (%p162) target = $region28
    $region27: #{tpu_custom_call.1} parent=5 // pred_region
      // Predicated region
      $region29: #{tpu_custom_call.1} parent=27 // pred_check
        %p165 = pneg %p63
      $region30: #{tpu_custom_call.1} parent=27 // pred_check_branch
        %167 = sbr.rel (%p165) target = $region32
      $region31: #{tpu_custom_call.1} parent=27 // pred_region
        %s168 = smul.u32 4, %s22
        %p169 = scmp.lt.s32.totalorder %s168, 11
        %s170 = scalar_select %p169, %s168, 11
        %s171 = smul.addr %s170, 8
        %s172 = scalar_lea.vmem %s3, %s171
        %s173 = smul.u32 4, %s22
      $region32: #{tpu_custom_call.1} parent=27 // pred_fallthru
        _
    $region28: #{tpu_custom_call.1} parent=5 // pred_fallthru
      _
    %p174 = scmp.le.s32.totalorder 1, %s22
    %p175 = scmp.lt.s32.totalorder %s22, 4
    %p176 = pnand %p174, %p175
    %p177 = pneg %p176
    // Predicated region
    $region33: #{tpu_custom_call.1} parent=5 // pred_check
      _
    $region34: #{tpu_custom_call.1} parent=5 // pred_check_branch
      %179 = sbr.rel (%p176) target = $region36
    $region35: #{tpu_custom_call.1} parent=5 // pred_region
      %s180 = ssub.s32 %s22, 1
      %p181 = pneg %p43
      %p182 = pneg %p40
      %s183 = smul.u32 4, %s27
      %p184 = scmp.lt.s32.totalorder %s183, 11
      %s185 = scalar_select %p184, %s183, 11
      %s186 = smul.addr %s185, 8
      %s187 = scalar_lea.vmem %s3, %s186
      %p188 = pneg %p69
      %p189 = pneg %p66
      %p190 = pneg %p90
      %p191 = pneg %p87
      %p192 = pneg %p111
      %p193 = pneg %p108
      %p194 = pneg %p137
      %p195 = pneg %p134
      %s196 = smul.u32 4, %s27
      %p197 = scmp.lt.s32.totalorder %s196, 11
      %s198 = scalar_select %p197, %s196, 11
      %s199 = smul.addr %s198, 8
      %s200 = scalar_lea.vmem %s6, %s199
      %s201 = smul.u32 4, %s27
      %p202 = scmp.lt.s32.totalorder %s201, 11
      %s203 = scalar_select %p202, %s201, 11
      %s204 = smul.addr %s203, 8
      %s205 = scalar_lea.vmem %s3, %s204
      %s206 = smul.u32 4, %s27
      %s207 = smul.u32 4, %s27
      %p208 = scmp.lt.s32.totalorder %s207, 11
      %s209 = scalar_select %p208, %s207, 11
      %s210 = smul.addr %s209, 8
      %s211 = scalar_lea.vmem %s6, %s210
      %s212 = smul.u32 4, %s27
      %s213 = smul.u32 %s27, 32
      %s214 = sld [smem:[#allocation3 + %s213]]
      loop: start=0, step=1, limit=32
      $region37: #{tpu_custom_call.1} parent=35 // loop_pre_header
        _
      $region38: #{tpu_custom_call.1} parent=35 // loop_header
        %s216 = sphi 0, %s220
        %p217 = scmp.ge.s32.totalorder %s216, 32
        %s221 = sphi %s214, %s224
      $region39: #{tpu_custom_call.1} parent=35 // loop_header_branch
        %219 = sbr.rel (%p217) target = $region43
      $region40: #{tpu_custom_call.1} parent=35 // loop_body
        %s222 = sadd.s32 %s213, %s216
        %s223 = sadd.s32 %s222, 1
        %s224 = sld [smem:[#allocation3 + %s223]]
        // While loop
        $region44: #{tpu_custom_call.1} parent=40 // loop_pre_header
          _
        $region45: #{tpu_custom_call.1} parent=40 // loop_header
          %s226 = sphi %s221, %s305
          %v227 = vphi inf, %v306
          %p228 = scmp.lt.s32.totalorder %s226, %s224
          %p229 = pneg %p228
        $region46: #{tpu_custom_call.1} parent=40 // loop_header_branch
          %231 = sbr.rel (%p229) target = $region50
        $region47: #{tpu_custom_call.1} parent=40 // loop_body
          %s232 = sld [smem:[#allocation4 + %s226]]
          %s233 = scalar_lea.vmem %s2, %s232
          %v234 = vld [vmem:[%s233] sm:$0x1]
          %s235 = sadd.s32 %s226, 1
          %s236 = sld [smem:[#allocation4 + %s235]]
          %s237 = scalar_lea.vmem %s2, %s236
          %v238 = vld [vmem:[%s237] sm:$0x1]
          %p239 = scmp.lt.s32.totalorder %s235, %s224
          %s240 = scalar_select %p239, 1, 0
          %v241 = vstv %s240
          %vm242 = vcmp.eq.s32.totalorder %v241, 1
          %v243 = vsel %vm242, %v238, inf
          %s244 = sadd.s32 %s226, 2
          %s245 = sld [smem:[#allocation4 + %s244]]
          %s246 = scalar_lea.vmem %s2, %s245
          %v247 = vld [vmem:[%s246] sm:$0x1]
          %p248 = scmp.lt.s32.totalorder %s244, %s224
          %s249 = scalar_select %p248, 1, 0
          %v250 = vstv %s249
          %vm251 = vcmp.eq.s32.totalorder %v250, 1
          %v252 = vsel %vm251, %v247, inf
          %s253 = sadd.s32 %s226, 3
          %s254 = sld [smem:[#allocation4 + %s253]]
          %s255 = scalar_lea.vmem %s2, %s254
          %v256 = vld [vmem:[%s255] sm:$0x1]
          %p257 = scmp.lt.s32.totalorder %s253, %s224
          %s258 = scalar_select %p257, 1, 0
          %v259 = vstv %s258
          %vm260 = vcmp.eq.s32.totalorder %v259, 1
          %v261 = vsel %vm260, %v256, inf
          %s262 = sadd.s32 %s226, 4
          %s263 = sld [smem:[#allocation4 + %s262]]
          %s264 = scalar_lea.vmem %s2, %s263
          %v265 = vld [vmem:[%s264] sm:$0x1]
          %p266 = scmp.lt.s32.totalorder %s262, %s224
          %s267 = scalar_select %p266, 1, 0
          %v268 = vstv %s267
          %vm269 = vcmp.eq.s32.totalorder %v268, 1
          %v270 = vsel %vm269, %v265, inf
          %s271 = sadd.s32 %s226, 5
          %s272 = sld [smem:[#allocation4 + %s271]]
          %s273 = scalar_lea.vmem %s2, %s272
          %v274 = vld [vmem:[%s273] sm:$0x1]
          %p275 = scmp.lt.s32.totalorder %s271, %s224
          %s276 = scalar_select %p275, 1, 0
          %v277 = vstv %s276
          %vm278 = vcmp.eq.s32.totalorder %v277, 1
          %v279 = vsel %vm278, %v274, inf
          %s280 = sadd.s32 %s226, 6
          %s281 = sld [smem:[#allocation4 + %s280]]
          %s282 = scalar_lea.vmem %s2, %s281
          %v283 = vld [vmem:[%s282] sm:$0x1]
          %p284 = scmp.lt.s32.totalorder %s280, %s224
          %s285 = scalar_select %p284, 1, 0
          %v286 = vstv %s285
          %vm287 = vcmp.eq.s32.totalorder %v286, 1
          %v288 = vsel %vm287, %v283, inf
          %s289 = sadd.s32 %s226, 7
          %s290 = sld [smem:[#allocation4 + %s289]]
          %s291 = scalar_lea.vmem %s2, %s290
          %v292 = vld [vmem:[%s291] sm:$0x1]
          %p293 = scmp.lt.s32.totalorder %s289, %s224
          %s294 = scalar_select %p293, 1, 0
          %v295 = vstv %s294
          %vm296 = vcmp.eq.s32.totalorder %v295, 1
          %v297 = vsel %vm296, %v292, inf
          %v298 = vmin.f32 %v234, %v243
          %v299 = vmin.f32 %v252, %v261
          %v300 = vmin.f32 %v270, %v279
          %v301 = vmin.f32 %v288, %v297
          %v302 = vmin.f32 %v298, %v299
          %v303 = vmin.f32 %v300, %v301
          %v304 = vmin.f32 %v302, %v303
          %s305 = sadd.s32 %s226, 8
          %v306 = vmin.f32 %v227, %v304
        $region48: #{tpu_custom_call.1} parent=40 // loop_footer
          _
        $region49: #{tpu_custom_call.1} parent=40 // loop_footer_branch
          %225 = sbr.rel target = $region45
        $region50: #{tpu_custom_call.1} parent=40 // loop_exit
          _
        %s307 = scalar_lea.vmem %s211, %s216
        %vm308 = vcmask 253952
        %309 = vst.msk [vmem:[%s307] sm:$0x1] %vm308, %v227
      $region41: #{tpu_custom_call.1} parent=35 // loop_footer
        %s220 = sadd.s32 1, %s216
      $region42: #{tpu_custom_call.1} parent=35 // loop_footer_branch
        %215 = sbr.rel target = $region38
      $region43: #{tpu_custom_call.1} parent=35 // loop_exit
        _
      %v310 = vld [vmem:[%s205] sm:$0xff]
      %v311 = vld [vmem:[%s205 + $0x8] sm:$0xff]
      %v312 = vld [vmem:[%s205 + $0x10] sm:$0xff]
      %v313 = vld [vmem:[%s205 + $0x18] sm:$0xff]
      %v314 = vld [vmem:[%s211] sm:$0xff]
      %v315 = vld [vmem:[%s211 + $0x8] sm:$0xff]
      %v316 = vld [vmem:[%s211 + $0x10] sm:$0xff]
      %v317 = vld [vmem:[%s211 + $0x18] sm:$0xff]
      %vm318 = vcmp.eq.f32.partialorder %v314, inf
      %vm319 = vcmp.eq.f32.partialorder %v315, inf
      %vm320 = vcmp.eq.f32.partialorder %v316, inf
      %vm321 = vcmp.eq.f32.partialorder %v317, inf
      %v322 = vsub.f32 %v310, %v314
      %v323 = vsub.f32 %v311, %v315
      %v324 = vsub.f32 %v312, %v316
      %v325 = vsub.f32 %v313, %v317
      %v326 = vsel %vm318, 0.0, %v322
      %v327 = vsel %vm319, 0.0, %v323
      %v328 = vsel %vm320, 0.0, %v324
      %v329 = vsel %vm321, 0.0, %v325
      %v330 = vld [vmem:[%s4] sm:$0xff]
      %v331 = vld [vmem:[%s4 + $0x8] sm:$0xff]
      %v332 = vld [vmem:[%s4 + $0x10] sm:$0xff]
      %v333 = vld [vmem:[%s4 + $0x18] sm:$0xff]
      %v334 = vld [vmem:[%s4 + $0x20] sm:$0xff]
      %v335 = vld [vmem:[%s4 + $0x28] sm:$0xff]
      %v336 = vld [vmem:[%s4 + $0x30] sm:$0xff]
      %v337 = vld [vmem:[%s4 + $0x38] sm:$0xff]
      %vm338 = vcmask 261120
      %v340 = vsel %vm338, %v326, 0
      %v343 = vsel %vm338, %v327, 0
      %v346 = vsel %vm338, %v328, 0
      %v349 = vsel %vm338, %v329, 0
      %351 = vmatprep.subr.mxu0 0.0
      %352 = vmatpush1.msra.mxu0 %v334
      %353 = vmatprep.subr.mxu0 0.0
      %354 = vmatpush1.msra.mxu0 %v335
      %355 = vmatprep.subr.mxu0 0.0
      %356 = vmatpush1.msra.mxu0 %v336
      %357 = vmatprep.subr.mxu0 0.0
      %358 = vmatpush1.msra.mxu0 %v337
      %359 = vmatprep.subr.mxu0 0.0
      %360 = vmatpush1.msra.mxu0 0.0
      %361 = vmatprep.subr.mxu0 0.0
      %362 = vmatpush1.msra.mxu0 0.0
      %363 = vmatprep.subr.mxu0 0.0
      %364 = vmatpush1.msra.mxu0 0.0
      %365 = vmatprep.subr.mxu0 0.0
      %366 = vmatpush1.msra.mxu0 0.0
      %367 = vmatprep.subr.mxu0 0.0
      %368 = vmatpush1.msra.mxu0 0.0
      %369 = vmatprep.subr.mxu0 0.0
      %370 = vmatpush1.msra.mxu0 0.0
      %371 = vmatprep.subr.mxu0 0.0
      %372 = vmatpush1.msra.mxu0 0.0
      %373 = vmatprep.subr.mxu0 0.0
      %374 = vmatpush1.msra.mxu0 0.0
      %375 = vmatprep.subr.mxu0 0.0
      %376 = vmatpush1.msra.mxu0 0.0
      %377 = vmatprep.subr.mxu0 0.0
      %378 = vmatpush1.msra.mxu0 0.0
      %379 = vmatprep.subr.mxu0 0.0
      %380 = vmatpush1.msra.mxu0 0.0
      %381 = vmatprep.subr.mxu0 0.0
      %382 = vmatpush1.msra.mxu0 0.0
      %383 = vmatprep.subr.mxu0 0.0
      %384 = vmatpush1.msra.mxu0 0.0
      %385 = vmatprep.subr.mxu0 0.0
      %386 = vmatpush1.msra.mxu0 0.0
      %387 = vmatprep.subr.mxu0 0.0
      %388 = vmatpush1.msra.mxu0 0.0
      %389 = vmatprep.subr.mxu0 0.0
      %390 = vmatpush1.msra.mxu0 0.0
      %391 = vmatprep.subr.mxu0 0.0
      %392 = vmatpush1.msra.mxu0 0.0
      %393 = vmatprep.subr.mxu0 0.0
      %394 = vmatpush1.msra.mxu0 0.0
      %395 = vmatprep.subr.mxu0 0.0
      %396 = vmatpush1.msra.mxu0 0.0
      %397 = vmatprep.subr.mxu0 0.0
      %398 = vmatpush1.msra.mxu0 0.0
      %399 = vmatprep.subr.mxu0 0.0
      %400 = vmatpush1.msra.mxu0 0.0
      %401 = vmatprep.subr.mxu0 0.0
      %402 = vmatpush1.msra.mxu0 0.0
      %403 = vmatprep.subr.mxu0 0.0
      %404 = vmatpush1.msra.mxu0 0.0
      %405 = vmatprep.subr.mxu0 0.0
      %406 = vmatpush1.msra.mxu0 0.0
      %407 = vmatprep.subr.mxu0 0.0
      %408 = vmatpush1.msra.mxu0 0.0
      %409 = vmatprep.subr.mxu0 0.0
      %410 = vmatpush1.msra.mxu0 0.0
      %411 = vmatprep.subr.mxu0 0.0
      %412 = vmatpush1.msra.mxu0 0.0
      %413 = vmatprep.subr.mxu0 0.0
      %414 = vmatpush1.msra.mxu0 0.0
      %415 = vmatprep.mubr.f32.mxu0 0.0
      %416 = vmatmul.mubr.f32.gmra.mrb[0].mxu0 %v340
      %v417 = vpop.f32.mrb[0].mxu0
      %v418 = vadd.f32 0.0, %v417
      %v419 = vpop.f32.mrb[0].mxu0
      %420 = vmatprep.mubr.f32.mxu0 0.0
      %421 = vmatmul.mubr.f32.gmra.mrb[0].mxu0 %v343
      %v422 = vpop.f32.mrb[0].mxu0
      %v423 = vadd.f32 0.0, %v422
      %v424 = vpop.f32.mrb[0].mxu0
      %425 = vmatprep.mubr.f32.mxu0 0.0
      %426 = vmatmul.mubr.f32.gmra.mrb[0].mxu0 %v346
      %v427 = vpop.f32.mrb[0].mxu0
      %v428 = vadd.f32 0.0, %v427
      %v429 = vpop.f32.mrb[0].mxu0
      %430 = vmatprep.mubr.f32.mxu0 0.0
      %431 = vmatmul.mubr.f32.gmra.mrb[0].mxu0 %v349
      %v432 = vpop.f32.mrb[0].mxu0
      %v433 = vadd.f32 0.0, %v432
      %v434 = vpop.f32.mrb[0].mxu0
      %435 = vdwg.mxu0
      %v437 = vsel %vm338, %v310, 0
      %v440 = vsel %vm338, %v311, 0
      %v443 = vsel %vm338, %v312, 0
      %v446 = vsel %vm338, %v313, 0
      %448 = vmatprep.subr.mxu0 0.0
      %449 = vmatpush1.msra.mxu0 %v330
      %450 = vmatprep.subr.mxu0 0.0
      %451 = vmatpush1.msra.mxu0 %v331
      %452 = vmatprep.subr.mxu0 0.0
      %453 = vmatpush1.msra.mxu0 %v332
      %454 = vmatprep.subr.mxu0 0.0
      %455 = vmatpush1.msra.mxu0 %v333
      %456 = vmatprep.subr.mxu0 0.0
      %457 = vmatpush1.msra.mxu0 0.0
      %458 = vmatprep.subr.mxu0 0.0
      %459 = vmatpush1.msra.mxu0 0.0
      %460 = vmatprep.subr.mxu0 0.0
      %461 = vmatpush1.msra.mxu0 0.0
      %462 = vmatprep.subr.mxu0 0.0
      %463 = vmatpush1.msra.mxu0 0.0
      %464 = vmatprep.subr.mxu0 0.0
      %465 = vmatpush1.msra.mxu0 0.0
      %466 = vmatprep.subr.mxu0 0.0
      %467 = vmatpush1.msra.mxu0 0.0
      %468 = vmatprep.subr.mxu0 0.0
      %469 = vmatpush1.msra.mxu0 0.0
      %470 = vmatprep.subr.mxu0 0.0
      %471 = vmatpush1.msra.mxu0 0.0
      %472 = vmatprep.subr.mxu0 0.0
      %473 = vmatpush1.msra.mxu0 0.0
      %474 = vmatprep.subr.mxu0 0.0
      %475 = vmatpush1.msra.mxu0 0.0
      %476 = vmatprep.subr.mxu0 0.0
      %477 = vmatpush1.msra.mxu0 0.0
      %478 = vmatprep.subr.mxu0 0.0
      %479 = vmatpush1.msra.mxu0 0.0
      %480 = vmatprep.subr.mxu0 0.0
      %481 = vmatpush1.msra.mxu0 0.0
      %482 = vmatprep.subr.mxu0 0.0
      %483 = vmatpush1.msra.mxu0 0.0
      %484 = vmatprep.subr.mxu0 0.0
      %485 = vmatpush1.msra.mxu0 0.0
      %486 = vmatprep.subr.mxu0 0.0
      %487 = vmatpush1.msra.mxu0 0.0
      %488 = vmatprep.subr.mxu0 0.0
      %489 = vmatpush1.msra.mxu0 0.0
      %490 = vmatprep.subr.mxu0 0.0
      %491 = vmatpush1.msra.mxu0 0.0
      %492 = vmatprep.subr.mxu0 0.0
      %493 = vmatpush1.msra.mxu0 0.0
      %494 = vmatprep.subr.mxu0 0.0
      %495 = vmatpush1.msra.mxu0 0.0
      %496 = vmatprep.subr.mxu0 0.0
      %497 = vmatpush1.msra.mxu0 0.0
      %498 = vmatprep.subr.mxu0 0.0
      %499 = vmatpush1.msra.mxu0 0.0
      %500 = vmatprep.subr.mxu0 0.0
      %501 = vmatpush1.msra.mxu0 0.0
      %502 = vmatprep.subr.mxu0 0.0
      %503 = vmatpush1.msra.mxu0 0.0
      %504 = vmatprep.subr.mxu0 0.0
      %505 = vmatpush1.msra.mxu0 0.0
      %506 = vmatprep.subr.mxu0 0.0
      %507 = vmatpush1.msra.mxu0 0.0
      %508 = vmatprep.subr.mxu0 0.0
      %509 = vmatpush1.msra.mxu0 0.0
      %510 = vmatprep.subr.mxu0 0.0
      %511 = vmatpush1.msra.mxu0 0.0
      %512 = vmatprep.mubr.f32.mxu0 0.0
      %513 = vmatmul.mubr.f32.gmra.mrb[0].mxu0 %v437
      %v514 = vpop.f32.mrb[0].mxu0
      %v515 = vadd.f32 %v418, %v514
      %v516 = vpop.f32.mrb[0].mxu0
      %517 = vmatprep.mubr.f32.mxu0 0.0
      %518 = vmatmul.mubr.f32.gmra.mrb[0].mxu0 %v440
      %v519 = vpop.f32.mrb[0].mxu0
      %v520 = vadd.f32 %v423, %v519
      %v521 = vpop.f32.mrb[0].mxu0
      %522 = vmatprep.mubr.f32.mxu0 0.0
      %523 = vmatmul.mubr.f32.gmra.mrb[0].mxu0 %v443
      %v524 = vpop.f32.mrb[0].mxu0
      %v525 = vadd.f32 %v428, %v524
      %v526 = vpop.f32.mrb[0].mxu0
      %527 = vmatprep.mubr.f32.mxu0 0.0
      %528 = vmatmul.mubr.f32.gmra.mrb[0].mxu0 %v446
      %v529 = vpop.f32.mrb[0].mxu0
      %v530 = vadd.f32 %v433, %v529
      %v531 = vpop.f32.mrb[0].mxu0
      %532 = vdwg.mxu0
      %v533 = vld [vmem:[%s5] sm:$0x1]
      %v535 = vlaneseq
      %v536 = vshrl.u32 %v535, 7
      %v537 = vsub.s32 0, %v536
      %v538 = vrot.slane %v533, %v537
      %v540 = vadd.f32 %v515, %v538
      %v541 = vadd.f32 %v520, %v538
      %v542 = vadd.f32 %v525, %v538
      %v543 = vadd.f32 %v530, %v538
      %vm544 = vcmp.gt.f32.partialorder %v540, 0.0
      %vm545 = vcmp.gt.f32.partialorder %v541, 0.0
      %vm546 = vcmp.gt.f32.partialorder %v542, 0.0
      %vm547 = vcmp.gt.f32.partialorder %v543, 0.0
      %v548 = vmul.f32 %v540, 0.01
      %v549 = vmul.f32 %v541, 0.01
      %v550 = vmul.f32 %v542, 0.01
      %v551 = vmul.f32 %v543, 0.01
      %v552 = vsel %vm544, %v540, %v548
      %v553 = vsel %vm545, %v541, %v549
      %v554 = vsel %vm546, %v542, %v550
      %v555 = vsel %vm547, %v543, %v551
      %v556 = vadd.f32 %v310, %v552
      %v557 = vadd.f32 %v311, %v553
      %v558 = vadd.f32 %v312, %v554
      %v559 = vadd.f32 %v313, %v555
      %560 = vst.msk [vmem:[%s211] sm:$0xff] %vm338, %v556
      %561 = vst.msk [vmem:[%s211 + $0x8] sm:$0xff] %vm338, %v557
      %562 = vst.msk [vmem:[%s211 + $0x10] sm:$0xff] %vm338, %v558
      %563 = vst.msk [vmem:[%s211 + $0x18] sm:$0xff] %vm338, %v559
      %s564 = smul.u32 4, %s27
      %p565 = scmp.lt.s32.totalorder %s564, 11
      %s566 = scalar_select %p565, %s564, 11
      %s567 = smul.addr %s566, 8
      %s568 = scalar_lea.vmem %s6, %s567
      // Predicated region
      $region51: #{tpu_custom_call.1} parent=35 // pred_check
        %p569 = pneg %p134
      $region52: #{tpu_custom_call.1} parent=35 // pred_check_branch
        %571 = sbr.rel (%p569) target = $region54
      $region53: #{tpu_custom_call.1} parent=35 // pred_region
        %s572 = smul.u32 4, %s27
      $region54: #{tpu_custom_call.1} parent=35 // pred_fallthru
        _
    $region36: #{tpu_custom_call.1} parent=5 // pred_fallthru
      _
    %p573 = scmp.le.s32.totalorder 2, %s22
    // Predicated region
    $region55: #{tpu_custom_call.1} parent=5 // pred_check
      %p574 = pneg %p573
    $region56: #{tpu_custom_call.1} parent=5 // pred_check_branch
      %576 = sbr.rel (%p574) target = $region58
    $region57: #{tpu_custom_call.1} parent=5 // pred_region
      %s577 = ssub.s32 %s22, 2
      // Predicated region
      $region59: #{tpu_custom_call.1} parent=57 // pred_check
        %p578 = pneg %p140
      $region60: #{tpu_custom_call.1} parent=57 // pred_check_branch
        %580 = sbr.rel (%p578) target = $region62
      $region61: #{tpu_custom_call.1} parent=57 // pred_region
        %s581 = smul.u32 4, %s28
        %p582 = scmp.lt.s32.totalorder %s581, 11
        %s583 = scalar_select %p582, %s581, 11
        %s584 = smul.addr %s583, 8
        %s585 = scalar_lea.vmem %s6, %s584
      $region62: #{tpu_custom_call.1} parent=57 // pred_fallthru
        _
    $region58: #{tpu_custom_call.1} parent=5 // pred_fallthru
      _
  $region6: #{tpu_custom_call.1} parent=0 // loop_footer
    %s26 = sadd.s32 1, %s22
  $region7: #{tpu_custom_call.1} parent=0 // loop_footer_branch
    %21 = sbr.rel target = $region3
  $region8: #{tpu_custom_call.1} parent=0 // loop_exit
    _

</llo_original>
